<compile_context>
chip_gen: v6e
topology: v6e:2x2x1
jax: 0.10.0
libtpu: 0.0.40
codegen_flags: <defaults>
</compile_context>

<pallas_src>
import functools

import numpy as np
import jax
import jax.numpy as jnp
from jax.experimental import pallas as pl
from jax.experimental.pallas import tpu as pltpu

PATH_LEN = 7                          # [author, mod, node, mod, node, mod, node]
NUM_TANH_HOPS = (PATH_LEN - 3) // 2   # modules applied with tanh (positions 1, 3)
LANE = 128                            # TPU lane width
SUBLANE = 8
MAX_TILE_B = 256                      # max batch rows per grid step


def _round_up(x, m):
    return ((x + m - 1) // m) * m


def _pick_tile_b(batch, max_tb=MAX_TILE_B):
    """Adaptive batch tile: small batches -> one small tile (no padded-row waste),
    medium batches -> 2 tiles (both TensorCores on v7x), large -> 256-row tiles."""
    b8 = _round_up(max(batch, 1), SUBLANE)
    if b8 <= LANE:
        return b8
    if b8 <= 2 * max_tb:
        return _round_up((b8 + 1) // 2, SUBLANE)
    return max_tb


def module_net_kernel(ids_ref,     # VMEM (TB, PATH_LEN) int32
                      emb_ref,     # VMEM (num_author, E)  bf16
                      wpack_ref,   # VMEM (E, NP)   packed module weights, bf16
                      bmod_ref,    # VMEM (M_pad, E) module biases, bf16
                      wfpack_ref,  # VMEM (E, NPF)  packed fused module@classifier weights, bf16
                      bfc_ref,     # VMEM (M_pad, C) fused biases, f32
                      eyepad_ref,  # VMEM (C, C_pad) exact 0/1 pad matrix, f32
                      out_ref,     # VMEM (TB, C_pad) f32
                      *, num_module):
    tb = ids_ref.shape[0]
    num_author, e = emb_ref.shape
    m_pad = bmod_ref.shape[0]
    c = bfc_ref.shape[1]

    ids = ids_ref[...]                                          # (TB, PATH_LEN)

    def onehot(col, n):                                         # (TB,1) int32 -> (TB,n) bool
        return col == jax.lax.broadcasted_iota(jnp.int32, (tb, n), 1)

    def select_sum(y_all, oh, width):
        # exclusive per-row masks -> masked sum of the per-module output slices.
        # (out-of-range module ids give an all-zero row, as in the previous version)
        y = jnp.where(oh[:, 0:1], y_all[:, 0:width], 0.0)
        for m in range(1, num_module):
            y = y + jnp.where(oh[:, m:m + 1],
                              y_all[:, m * width:(m + 1) * width], 0.0)
        return y

    # ---- embedding lookup: one-hot(author) @ emb (bf16 MXU, f32 acc) --------
    # TODO(synk): for num_author >> 1k switch to a scalar-prefetch row gather
    # (PrefetchScalarGridSpec + pl.Element index_map) instead of the one-hot.
    oh_a = onehot(ids[:, 0:1], num_author).astype(jnp.bfloat16)
    x = jnp.dot(oh_a, emb_ref[...], preferred_element_type=jnp.float32)   # (TB, E) f32

    # ---- tanh hops: ONE packed (TB,E)@(E, M*E) matmul + masked combine ------
    for h in range(NUM_TANH_HOPS):
        col = ids[:, 1 + 2 * h:2 + 2 * h]                       # (TB, 1)
        oh = onehot(col, m_pad)                                  # hoisted: one iota+compare per hop
        y_all = jnp.dot(x.astype(jnp.bfloat16), wpack_ref[...],
                        preferred_element_type=jnp.float32)      # (TB, NP)
        y = select_sum(y_all, oh, e)                             # (TB, E)
        b = jnp.dot(oh.astype(jnp.bfloat16), bmod_ref[...],
                    preferred_element_type=jnp.float32)          # gathered bias (TB, E)
        x = jnp.tanh(y + b)                                      # f32 tanh (no bf16 EUP on v5e)

    # ---- final module hop fused with the classifier -------------------------
    col = ids[:, PATH_LEN - 2:PATH_LEN - 1]
    oh = onehot(col, m_pad)
    y_all = jnp.dot(x.astype(jnp.bfloat16), wfpack_ref[...],
                    preferred_element_type=jnp.float32)          # (TB, NPF)
    y = select_sum(y_all, oh, c)                                 # (TB, C)
    y = y + jnp.dot(oh.astype(jnp.float32), bfc_ref[...],
                    preferred_element_type=jnp.float32)          # fused bias (TB, C)
    # lane-dense full-block store: exact 0/1 pad matmul C -> C_pad; padded lanes stay 0.
    out_ref[...] = jnp.dot(y, eyepad_ref[...], preferred_element_type=jnp.float32)


def module_net_forward(paths, emb, w_mods, b_mods, w_cls, b_cls, *, max_tb=MAX_TILE_B):
    paths = jnp.asarray(paths, jnp.int32)
    emb = jnp.asarray(emb, jnp.float32)
    w_mods = jnp.asarray(w_mods, jnp.float32)
    b_mods = jnp.asarray(b_mods, jnp.float32)
    w_cls = jnp.asarray(w_cls, jnp.float32)
    b_cls = jnp.asarray(b_cls, jnp.float32)

    B = paths.shape[0]
    num_author, E = emb.shape
    num_module = w_mods.shape[0]
    C = w_cls.shape[1]

    m_pad = _round_up(num_module, SUBLANE)
    np_pack = _round_up(num_module * E, LANE)      # packed hop output lanes
    npf_pack = _round_up(num_module * C, LANE)     # packed fused-stage output lanes
    c_pad = _round_up(C, LANE)

    tb = _pick_tile_b(B, max_tb)
    b_pad = _round_up(B, tb)

    # Padded batch rows use id 0 (valid indices, results discarded in the slice).
    paths_p = jnp.zeros((b_pad, PATH_LEN), jnp.int32).at[:B].set(paths)

    # bf16 MXU operands (accumulation stays f32 inside the kernel).
    emb_bf = emb.astype(jnp.bfloat16)

    # packed module weights: wpack[:, m*E:(m+1)*E] = W_m  (layout [in, out])
    wpack = jnp.zeros((E, np_pack), jnp.float32).at[:, :num_module * E].set(
        jnp.transpose(w_mods, (1, 0, 2)).reshape(E, num_module * E))
    wpack_bf = wpack.astype(jnp.bfloat16)
    bmod_bf = jnp.zeros((m_pad, E), jnp.float32).at[:num_module].set(
        b_mods).astype(jnp.bfloat16)

    # Final module hop fused with the classifier (exact: linear composition).
    w_fused = jnp.einsum('mio,oc->mic', w_mods, w_cls)            # (M, E, C)
    b_fused = b_mods @ w_cls + b_cls.reshape(1, C)                # (M, C)
    wfpack = jnp.zeros((E, npf_pack), jnp.float32).at[:, :num_module * C].set(
        jnp.transpose(w_fused, (1, 0, 2)).reshape(E, num_module * C))
    wfpack_bf = wfpack.astype(jnp.bfloat16)
    bfc = jnp.zeros((m_pad, C), jnp.float32).at[:num_module].set(b_fused)

    # Exact 0/1 pad matrix C -> C_pad for the lane-dense full-block output store.
    eye_pad = jnp.zeros((C, c_pad), jnp.float32).at[:, :C].set(
        jnp.eye(C, dtype=jnp.float32))

    grid_spec = pltpu.PrefetchScalarGridSpec(
        num_scalar_prefetch=0,
        grid=(b_pad // tb,),                       # one batch tile per grid step
        in_specs=[
            pl.BlockSpec((tb, PATH_LEN), lambda i: (i, 0)),
            pl.BlockSpec((num_author, E), lambda i: (0, 0)),
            pl.BlockSpec((E, np_pack), lambda i: (0, 0)),
            pl.BlockSpec((m_pad, E), lambda i: (0, 0)),
            pl.BlockSpec((E, npf_pack), lambda i: (0, 0)),
            pl.BlockSpec((m_pad, C), lambda i: (0, 0)),
            pl.BlockSpec((C, c_pad), lambda i: (0, 0)),
        ],
        out_specs=pl.BlockSpec((tb, c_pad), lambda i: (i, 0)),
    )

    kernel = functools.partial(module_net_kernel, num_module=num_module)

    # TODO(synk): if the module bank scales (many modules / large E), add
    # pipeline_mode=pl.Buffered(1) on the grid-invariant weight inputs and set
    # vmem_limit_bytes to budget against v7x's 64 MiB / v5e's 16 MiB default
    # scoped VMEM. At the current sizes the defaults are far from the limit.
    out = pl.pallas_call(
        kernel,
        out_shape=jax.ShapeDtypeStruct((b_pad, c_pad), jnp.float32),
        grid_spec=grid_spec,
        compiler_params=pltpu.CompilerParams(
            dimension_semantics=("parallel",)),    # independent batch tiles (2 TCs on v7x)
    )(paths_p, emb_bf, wpack_bf, bmod_bf, wfpack_bf, bfc, eye_pad)
    return out[:B, :C]


def module_net_ref(paths, emb, w_mods, b_mods, w_cls, b_cls):
    """Pure-JAX f32 reference mirroring ModuleNet.forward."""
    outs = []
    for p in np.asarray(paths):
        x = emb[p[0]][None, :]
        for i in range(1, PATH_LEN - 2, 2):
            x = jnp.tanh(x @ w_mods[p[i]] + b_mods[p[i]][None, :])
        x = x @ w_mods[p[-2]] + b_mods[p[-2]][None, :]
        outs.append(x)
    x = jnp.concatenate(outs, 0)
    return x @ w_cls + b_cls


if __name__ == "__main__":
    # small shapes consistent with the module's __init__
    num_author = 16
    num_module = 6
    embed_size = 32
    classifier_output_dim = 8
    batch = 4

    key = jax.random.PRNGKey(0)
    k_emb, k_wm, k_bm, k_wc, k_bc, k_auth, k_mod, k_node = jax.random.split(key, 8)

    # deterministic parameters (synthetic init; no checkpoint load)
    emb = jax.random.normal(k_emb, (num_author, embed_size), jnp.float32) * 0.1
    w_mods = jax.random.normal(k_wm, (num_module, embed_size, embed_size), jnp.float32) * 0.1
    b_mods = jax.random.normal(k_bm, (num_module, embed_size), jnp.float32) * 0.1
    w_cls = jax.random.normal(k_wc, (embed_size, classifier_output_dim), jnp.float32) * 0.1
    b_cls = jax.random.normal(k_bc, (1, classifier_output_dim), jnp.float32) * 0.1

    # deterministic batch of fixed-length paths
    author_ids = jax.random.randint(k_auth, (batch, 1), 0, num_author, jnp.int32)
    module_ids = jax.random.randint(k_mod, (batch, 3), 0, num_module, jnp.int32)
    node_ids = jax.random.randint(k_node, (batch, 3), 0, num_author, jnp.int32)  # unused by forward
    paths = jnp.concatenate(
        [author_ids,
         module_ids[:, 0:1], node_ids[:, 0:1],
         module_ids[:, 1:2], node_ids[:, 1:2],
         module_ids[:, 2:3], node_ids[:, 2:3]], axis=1)          # (batch, PATH_LEN)

    out = module_net_forward(paths, emb, w_mods, b_mods, w_cls, b_cls)
    out = jax.block_until_ready(out)

    ref = module_net_ref(paths, emb, w_mods, b_mods, w_cls, b_cls)
    assert out.shape == (batch, classifier_output_dim)
    # bf16 MXU operands (f32 accumulation) -> looser tolerance than pure-f32.
    assert np.allclose(np.asarray(out), np.asarray(ref), atol=2e-2, rtol=2e-2), (
        np.max(np.abs(np.asarray(out) - np.asarray(ref))))

    # TODO(synk): variable-length paths (the PyTorch list-of-lists batch) would
    # need one compiled kernel per path length; fixed to PATH_LEN=7 here.
    print("KERNEL_OK")
</pallas_src>

<mosaic_0001>
module attributes {stable_mosaic.version = 11 : i64} {
  func.func @module_net_kernel(%arg0: i32, %arg1: memref<8x7xi32, #tpu.memory_space<vmem>>, %arg2: memref<16x32xbf16, #tpu.memory_space<vmem>>, %arg3: memref<32x256xbf16, #tpu.memory_space<vmem>>, %arg4: memref<8x32xbf16, #tpu.memory_space<vmem>>, %arg5: memref<32x128xbf16, #tpu.memory_space<vmem>>, %arg6: memref<8x8xf32, #tpu.memory_space<vmem>>, %arg7: memref<8x128xf32, #tpu.memory_space<vmem>>, %arg8: memref<8x128xf32, #tpu.memory_space<vmem>>) attributes {dimension_semantics = [#tpu.dimension_semantics<parallel>], iteration_bounds = array<i64: 1>, scalar_prefetch = 0 : i64, scratch_operands = 0 : i64, tpu.core_type = #tpu.core_type<tc>, window_params = [{transform_indices = @transform_0, window_bounds = array<i64: 8, 7>}, {pipeline_mode = #tpu.pipeline_mode<synchronous>, transform_indices = @transform_1, window_bounds = array<i64: 16, 32>}, {pipeline_mode = #tpu.pipeline_mode<synchronous>, transform_indices = @transform_2, window_bounds = array<i64: 32, 256>}, {pipeline_mode = #tpu.pipeline_mode<synchronous>, transform_indices = @transform_3, window_bounds = array<i64: 8, 32>}, {pipeline_mode = #tpu.pipeline_mode<synchronous>, transform_indices = @transform_4, window_bounds = array<i64: 32, 128>}, {pipeline_mode = #tpu.pipeline_mode<synchronous>, transform_indices = @transform_5, window_bounds = array<i64: 8, 8>}, {pipeline_mode = #tpu.pipeline_mode<synchronous>, transform_indices = @transform_6, window_bounds = array<i64: 8, 128>}, {transform_indices = @transform_7, window_bounds = array<i64: 8, 128>}]} {
    %c0 = arith.constant 0 : index
    %c0_0 = arith.constant 0 : index
    %0 = vector.load %arg1[%c0, %c0_0] : memref<8x7xi32, #tpu.memory_space<vmem>>, vector<8x7xi32>
    %1 = vector.extract_strided_slice %0 {offsets = [0, 0], sizes = [8, 1], strides = [1, 1]} : vector<8x7xi32> to vector<8x1xi32>
    %2 = tpu.iota {dimensions = array<i32: 1>} : vector<8x16xi32>
    %3 = vector.broadcast %1 : vector<8x1xi32> to vector<8x16xi32>
    %4 = arith.cmpi eq, %3, %2 : vector<8x16xi32>
    %5 = arith.extui %4 : vector<8x16xi1> to vector<8x16xi32>
    %6 = arith.sitofp %5 : vector<8x16xi32> to vector<8x16xf32>
    %7 = arith.truncf %6 : vector<8x16xf32> to vector<8x16xbf16>
    %c0_1 = arith.constant 0 : index
    %c0_2 = arith.constant 0 : index
    %8 = vector.load %arg2[%c0_1, %c0_2] : memref<16x32xbf16, #tpu.memory_space<vmem>>, vector<16x32xbf16>
    %cst = arith.constant dense<0.000000e+00> : vector<8x32xf32>
    %9 = tpu.matmul %7, %8, %cst {dimension_numbers = #tpu.dot_dimension_numbers<[1], [0], [0], [1], [0, 0, 1, 1], [], []>} : vector<8x16xbf16>, vector<16x32xbf16>, vector<8x32xf32> -> vector<8x32xf32>
    %10 = vector.extract_strided_slice %0 {offsets = [0, 1], sizes = [8, 1], strides = [1, 1]} : vector<8x7xi32> to vector<8x1xi32>
    %11 = tpu.iota {dimensions = array<i32: 1>} : vector<8x8xi32>
    %12 = vector.broadcast %10 : vector<8x1xi32> to vector<8x8xi32>
    %13 = arith.cmpi eq, %12, %11 : vector<8x8xi32>
    %14 = arith.truncf %9 : vector<8x32xf32> to vector<8x32xbf16>
    %c0_3 = arith.constant 0 : index
    %c0_4 = arith.constant 0 : index
    %15 = vector.load %arg3[%c0_3, %c0_4] : memref<32x256xbf16, #tpu.memory_space<vmem>>, vector<32x256xbf16>
    %cst_5 = arith.constant dense<0.000000e+00> : vector<8x256xf32>
    %16 = tpu.matmul %14, %15, %cst_5 {dimension_numbers = #tpu.dot_dimension_numbers<[1], [0], [0], [1], [0, 0, 1, 1], [], []>} : vector<8x32xbf16>, vector<32x256xbf16>, vector<8x256xf32> -> vector<8x256xf32>
    %17 = vector.extract_strided_slice %13 {offsets = [0, 0], sizes = [8, 1], strides = [1, 1]} : vector<8x8xi1> to vector<8x1xi1>
    %18 = vector.extract_strided_slice %16 {offsets = [0, 0], sizes = [8, 32], strides = [1, 1]} : vector<8x256xf32> to vector<8x32xf32>
    %cst_6 = arith.constant 0.000000e+00 : f32
    %19 = vector.shape_cast %17 : vector<8x1xi1> to vector<8x1xi1>
    %20 = vector.broadcast %19 : vector<8x1xi1> to vector<8x32xi1>
    %21 = vector.broadcast %cst_6 : f32 to vector<8x32xf32>
    %22 = arith.select %20, %18, %21 : vector<8x32xi1>, vector<8x32xf32>
    %23 = vector.extract_strided_slice %13 {offsets = [0, 1], sizes = [8, 1], strides = [1, 1]} : vector<8x8xi1> to vector<8x1xi1>
    %24 = vector.extract_strided_slice %16 {offsets = [0, 32], sizes = [8, 32], strides = [1, 1]} : vector<8x256xf32> to vector<8x32xf32>
    %cst_7 = arith.constant 0.000000e+00 : f32
    %25 = vector.shape_cast %23 : vector<8x1xi1> to vector<8x1xi1>
    %26 = vector.broadcast %25 : vector<8x1xi1> to vector<8x32xi1>
    %27 = vector.broadcast %cst_7 : f32 to vector<8x32xf32>
    %28 = arith.select %26, %24, %27 : vector<8x32xi1>, vector<8x32xf32>
    %29 = arith.addf %22, %28 : vector<8x32xf32>
    %30 = vector.extract_strided_slice %13 {offsets = [0, 2], sizes = [8, 1], strides = [1, 1]} : vector<8x8xi1> to vector<8x1xi1>
    %31 = vector.extract_strided_slice %16 {offsets = [0, 64], sizes = [8, 32], strides = [1, 1]} : vector<8x256xf32> to vector<8x32xf32>
    %cst_8 = arith.constant 0.000000e+00 : f32
    %32 = vector.shape_cast %30 : vector<8x1xi1> to vector<8x1xi1>
    %33 = vector.broadcast %32 : vector<8x1xi1> to vector<8x32xi1>
    %34 = vector.broadcast %cst_8 : f32 to vector<8x32xf32>
    %35 = arith.select %33, %31, %34 : vector<8x32xi1>, vector<8x32xf32>
    %36 = arith.addf %29, %35 : vector<8x32xf32>
    %37 = vector.extract_strided_slice %13 {offsets = [0, 3], sizes = [8, 1], strides = [1, 1]} : vector<8x8xi1> to vector<8x1xi1>
    %38 = vector.extract_strided_slice %16 {offsets = [0, 96], sizes = [8, 32], strides = [1, 1]} : vector<8x256xf32> to vector<8x32xf32>
    %cst_9 = arith.constant 0.000000e+00 : f32
    %39 = vector.shape_cast %37 : vector<8x1xi1> to vector<8x1xi1>
    %40 = vector.broadcast %39 : vector<8x1xi1> to vector<8x32xi1>
    %41 = vector.broadcast %cst_9 : f32 to vector<8x32xf32>
    %42 = arith.select %40, %38, %41 : vector<8x32xi1>, vector<8x32xf32>
    %43 = arith.addf %36, %42 : vector<8x32xf32>
    %44 = vector.extract_strided_slice %13 {offsets = [0, 4], sizes = [8, 1], strides = [1, 1]} : vector<8x8xi1> to vector<8x1xi1>
    %45 = vector.extract_strided_slice %16 {offsets = [0, 128], sizes = [8, 32], strides = [1, 1]} : vector<8x256xf32> to vector<8x32xf32>
    %cst_10 = arith.constant 0.000000e+00 : f32
    %46 = vector.shape_cast %44 : vector<8x1xi1> to vector<8x1xi1>
    %47 = vector.broadcast %46 : vector<8x1xi1> to vector<8x32xi1>
    %48 = vector.broadcast %cst_10 : f32 to vector<8x32xf32>
    %49 = arith.select %47, %45, %48 : vector<8x32xi1>, vector<8x32xf32>
    %50 = arith.addf %43, %49 : vector<8x32xf32>
    %51 = vector.extract_strided_slice %13 {offsets = [0, 5], sizes = [8, 1], strides = [1, 1]} : vector<8x8xi1> to vector<8x1xi1>
    %52 = vector.extract_strided_slice %16 {offsets = [0, 160], sizes = [8, 32], strides = [1, 1]} : vector<8x256xf32> to vector<8x32xf32>
    %cst_11 = arith.constant 0.000000e+00 : f32
    %53 = vector.shape_cast %51 : vector<8x1xi1> to vector<8x1xi1>
    %54 = vector.broadcast %53 : vector<8x1xi1> to vector<8x32xi1>
    %55 = vector.broadcast %cst_11 : f32 to vector<8x32xf32>
    %56 = arith.select %54, %52, %55 : vector<8x32xi1>, vector<8x32xf32>
    %57 = arith.addf %50, %56 : vector<8x32xf32>
    %58 = arith.extui %13 : vector<8x8xi1> to vector<8x8xi32>
    %59 = arith.sitofp %58 : vector<8x8xi32> to vector<8x8xf32>
    %60 = arith.truncf %59 : vector<8x8xf32> to vector<8x8xbf16>
    %c0_12 = arith.constant 0 : index
    %c0_13 = arith.constant 0 : index
    %61 = vector.load %arg4[%c0_12, %c0_13] : memref<8x32xbf16, #tpu.memory_space<vmem>>, vector<8x32xbf16>
    %cst_14 = arith.constant dense<0.000000e+00> : vector<8x32xf32>
    %62 = tpu.matmul %60, %61, %cst_14 {dimension_numbers = #tpu.dot_dimension_numbers<[1], [0], [0], [1], [0, 0, 1, 1], [], []>} : vector<8x8xbf16>, vector<8x32xbf16>, vector<8x32xf32> -> vector<8x32xf32>
    %63 = arith.addf %57, %62 : vector<8x32xf32>
    %64 = math.tanh %63 : vector<8x32xf32>
    %65 = vector.extract_strided_slice %0 {offsets = [0, 3], sizes = [8, 1], strides = [1, 1]} : vector<8x7xi32> to vector<8x1xi32>
    %66 = tpu.iota {dimensions = array<i32: 1>} : vector<8x8xi32>
    %67 = vector.broadcast %65 : vector<8x1xi32> to vector<8x8xi32>
    %68 = arith.cmpi eq, %67, %66 : vector<8x8xi32>
    %69 = arith.truncf %64 : vector<8x32xf32> to vector<8x32xbf16>
    %c0_15 = arith.constant 0 : index
    %c0_16 = arith.constant 0 : index
    %70 = vector.load %arg3[%c0_15, %c0_16] : memref<32x256xbf16, #tpu.memory_space<vmem>>, vector<32x256xbf16>
    %cst_17 = arith.constant dense<0.000000e+00> : vector<8x256xf32>
    %71 = tpu.matmul %69, %70, %cst_17 {dimension_numbers = #tpu.dot_dimension_numbers<[1], [0], [0], [1], [0, 0, 1, 1], [], []>} : vector<8x32xbf16>, vector<32x256xbf16>, vector<8x256xf32> -> vector<8x256xf32>
    %72 = vector.extract_strided_slice %68 {offsets = [0, 0], sizes = [8, 1], strides = [1, 1]} : vector<8x8xi1> to vector<8x1xi1>
    %73 = vector.extract_strided_slice %71 {offsets = [0, 0], sizes = [8, 32], strides = [1, 1]} : vector<8x256xf32> to vector<8x32xf32>
    %cst_18 = arith.constant 0.000000e+00 : f32
    %74 = vector.shape_cast %72 : vector<8x1xi1> to vector<8x1xi1>
    %75 = vector.broadcast %74 : vector<8x1xi1> to vector<8x32xi1>
    %76 = vector.broadcast %cst_18 : f32 to vector<8x32xf32>
    %77 = arith.select %75, %73, %76 : vector<8x32xi1>, vector<8x32xf32>
    %78 = vector.extract_strided_slice %68 {offsets = [0, 1], sizes = [8, 1], strides = [1, 1]} : vector<8x8xi1> to vector<8x1xi1>
    %79 = vector.extract_strided_slice %71 {offsets = [0, 32], sizes = [8, 32], strides = [1, 1]} : vector<8x256xf32> to vector<8x32xf32>
    %cst_19 = arith.constant 0.000000e+00 : f32
    %80 = vector.shape_cast %78 : vector<8x1xi1> to vector<8x1xi1>
    %81 = vector.broadcast %80 : vector<8x1xi1> to vector<8x32xi1>
    %82 = vector.broadcast %cst_19 : f32 to vector<8x32xf32>
    %83 = arith.select %81, %79, %82 : vector<8x32xi1>, vector<8x32xf32>
    %84 = arith.addf %77, %83 : vector<8x32xf32>
    %85 = vector.extract_strided_slice %68 {offsets = [0, 2], sizes = [8, 1], strides = [1, 1]} : vector<8x8xi1> to vector<8x1xi1>
    %86 = vector.extract_strided_slice %71 {offsets = [0, 64], sizes = [8, 32], strides = [1, 1]} : vector<8x256xf32> to vector<8x32xf32>
    %cst_20 = arith.constant 0.000000e+00 : f32
    %87 = vector.shape_cast %85 : vector<8x1xi1> to vector<8x1xi1>
    %88 = vector.broadcast %87 : vector<8x1xi1> to vector<8x32xi1>
    %89 = vector.broadcast %cst_20 : f32 to vector<8x32xf32>
    %90 = arith.select %88, %86, %89 : vector<8x32xi1>, vector<8x32xf32>
    %91 = arith.addf %84, %90 : vector<8x32xf32>
    %92 = vector.extract_strided_slice %68 {offsets = [0, 3], sizes = [8, 1], strides = [1, 1]} : vector<8x8xi1> to vector<8x1xi1>
    %93 = vector.extract_strided_slice %71 {offsets = [0, 96], sizes = [8, 32], strides = [1, 1]} : vector<8x256xf32> to vector<8x32xf32>
    %cst_21 = arith.constant 0.000000e+00 : f32
    %94 = vector.shape_cast %92 : vector<8x1xi1> to vector<8x1xi1>
    %95 = vector.broadcast %94 : vector<8x1xi1> to vector<8x32xi1>
    %96 = vector.broadcast %cst_21 : f32 to vector<8x32xf32>
    %97 = arith.select %95, %93, %96 : vector<8x32xi1>, vector<8x32xf32>
    %98 = arith.addf %91, %97 : vector<8x32xf32>
    %99 = vector.extract_strided_slice %68 {offsets = [0, 4], sizes = [8, 1], strides = [1, 1]} : vector<8x8xi1> to vector<8x1xi1>
    %100 = vector.extract_strided_slice %71 {offsets = [0, 128], sizes = [8, 32], strides = [1, 1]} : vector<8x256xf32> to vector<8x32xf32>
    %cst_22 = arith.constant 0.000000e+00 : f32
    %101 = vector.shape_cast %99 : vector<8x1xi1> to vector<8x1xi1>
    %102 = vector.broadcast %101 : vector<8x1xi1> to vector<8x32xi1>
    %103 = vector.broadcast %cst_22 : f32 to vector<8x32xf32>
    %104 = arith.select %102, %100, %103 : vector<8x32xi1>, vector<8x32xf32>
    %105 = arith.addf %98, %104 : vector<8x32xf32>
    %106 = vector.extract_strided_slice %68 {offsets = [0, 5], sizes = [8, 1], strides = [1, 1]} : vector<8x8xi1> to vector<8x1xi1>
    %107 = vector.extract_strided_slice %71 {offsets = [0, 160], sizes = [8, 32], strides = [1, 1]} : vector<8x256xf32> to vector<8x32xf32>
    %cst_23 = arith.constant 0.000000e+00 : f32
    %108 = vector.shape_cast %106 : vector<8x1xi1> to vector<8x1xi1>
    %109 = vector.broadcast %108 : vector<8x1xi1> to vector<8x32xi1>
    %110 = vector.broadcast %cst_23 : f32 to vector<8x32xf32>
    %111 = arith.select %109, %107, %110 : vector<8x32xi1>, vector<8x32xf32>
    %112 = arith.addf %105, %111 : vector<8x32xf32>
    %113 = arith.extui %68 : vector<8x8xi1> to vector<8x8xi32>
    %114 = arith.sitofp %113 : vector<8x8xi32> to vector<8x8xf32>
    %115 = arith.truncf %114 : vector<8x8xf32> to vector<8x8xbf16>
    %c0_24 = arith.constant 0 : index
    %c0_25 = arith.constant 0 : index
    %116 = vector.load %arg4[%c0_24, %c0_25] : memref<8x32xbf16, #tpu.memory_space<vmem>>, vector<8x32xbf16>
    %cst_26 = arith.constant dense<0.000000e+00> : vector<8x32xf32>
    %117 = tpu.matmul %115, %116, %cst_26 {dimension_numbers = #tpu.dot_dimension_numbers<[1], [0], [0], [1], [0, 0, 1, 1], [], []>} : vector<8x8xbf16>, vector<8x32xbf16>, vector<8x32xf32> -> vector<8x32xf32>
    %118 = arith.addf %112, %117 : vector<8x32xf32>
    %119 = math.tanh %118 : vector<8x32xf32>
    %120 = vector.extract_strided_slice %0 {offsets = [0, 5], sizes = [8, 1], strides = [1, 1]} : vector<8x7xi32> to vector<8x1xi32>
    %121 = tpu.iota {dimensions = array<i32: 1>} : vector<8x8xi32>
    %122 = vector.broadcast %120 : vector<8x1xi32> to vector<8x8xi32>
    %123 = arith.cmpi eq, %122, %121 : vector<8x8xi32>
    %124 = arith.truncf %119 : vector<8x32xf32> to vector<8x32xbf16>
    %c0_27 = arith.constant 0 : index
    %c0_28 = arith.constant 0 : index
    %125 = vector.load %arg5[%c0_27, %c0_28] : memref<32x128xbf16, #tpu.memory_space<vmem>>, vector<32x128xbf16>
    %cst_29 = arith.constant dense<0.000000e+00> : vector<8x128xf32>
    %126 = tpu.matmul %124, %125, %cst_29 {dimension_numbers = #tpu.dot_dimension_numbers<[1], [0], [0], [1], [0, 0, 1, 1], [], []>} : vector<8x32xbf16>, vector<32x128xbf16>, vector<8x128xf32> -> vector<8x128xf32>
    %127 = vector.extract_strided_slice %123 {offsets = [0, 0], sizes = [8, 1], strides = [1, 1]} : vector<8x8xi1> to vector<8x1xi1>
    %128 = vector.extract_strided_slice %126 {offsets = [0, 0], sizes = [8, 8], strides = [1, 1]} : vector<8x128xf32> to vector<8x8xf32>
    %cst_30 = arith.constant 0.000000e+00 : f32
    %129 = vector.shape_cast %127 : vector<8x1xi1> to vector<8x1xi1>
    %130 = vector.broadcast %129 : vector<8x1xi1> to vector<8x8xi1>
    %131 = vector.broadcast %cst_30 : f32 to vector<8x8xf32>
    %132 = arith.select %130, %128, %131 : vector<8x8xi1>, vector<8x8xf32>
    %133 = vector.extract_strided_slice %123 {offsets = [0, 1], sizes = [8, 1], strides = [1, 1]} : vector<8x8xi1> to vector<8x1xi1>
    %134 = vector.extract_strided_slice %126 {offsets = [0, 8], sizes = [8, 8], strides = [1, 1]} : vector<8x128xf32> to vector<8x8xf32>
    %cst_31 = arith.constant 0.000000e+00 : f32
    %135 = vector.shape_cast %133 : vector<8x1xi1> to vector<8x1xi1>
    %136 = vector.broadcast %135 : vector<8x1xi1> to vector<8x8xi1>
    %137 = vector.broadcast %cst_31 : f32 to vector<8x8xf32>
    %138 = arith.select %136, %134, %137 : vector<8x8xi1>, vector<8x8xf32>
    %139 = arith.addf %132, %138 : vector<8x8xf32>
    %140 = vector.extract_strided_slice %123 {offsets = [0, 2], sizes = [8, 1], strides = [1, 1]} : vector<8x8xi1> to vector<8x1xi1>
    %141 = vector.extract_strided_slice %126 {offsets = [0, 16], sizes = [8, 8], strides = [1, 1]} : vector<8x128xf32> to vector<8x8xf32>
    %cst_32 = arith.constant 0.000000e+00 : f32
    %142 = vector.shape_cast %140 : vector<8x1xi1> to vector<8x1xi1>
    %143 = vector.broadcast %142 : vector<8x1xi1> to vector<8x8xi1>
    %144 = vector.broadcast %cst_32 : f32 to vector<8x8xf32>
    %145 = arith.select %143, %141, %144 : vector<8x8xi1>, vector<8x8xf32>
    %146 = arith.addf %139, %145 : vector<8x8xf32>
    %147 = vector.extract_strided_slice %123 {offsets = [0, 3], sizes = [8, 1], strides = [1, 1]} : vector<8x8xi1> to vector<8x1xi1>
    %148 = vector.extract_strided_slice %126 {offsets = [0, 24], sizes = [8, 8], strides = [1, 1]} : vector<8x128xf32> to vector<8x8xf32>
    %cst_33 = arith.constant 0.000000e+00 : f32
    %149 = vector.shape_cast %147 : vector<8x1xi1> to vector<8x1xi1>
    %150 = vector.broadcast %149 : vector<8x1xi1> to vector<8x8xi1>
    %151 = vector.broadcast %cst_33 : f32 to vector<8x8xf32>
    %152 = arith.select %150, %148, %151 : vector<8x8xi1>, vector<8x8xf32>
    %153 = arith.addf %146, %152 : vector<8x8xf32>
    %154 = vector.extract_strided_slice %123 {offsets = [0, 4], sizes = [8, 1], strides = [1, 1]} : vector<8x8xi1> to vector<8x1xi1>
    %155 = vector.extract_strided_slice %126 {offsets = [0, 32], sizes = [8, 8], strides = [1, 1]} : vector<8x128xf32> to vector<8x8xf32>
    %cst_34 = arith.constant 0.000000e+00 : f32
    %156 = vector.shape_cast %154 : vector<8x1xi1> to vector<8x1xi1>
    %157 = vector.broadcast %156 : vector<8x1xi1> to vector<8x8xi1>
    %158 = vector.broadcast %cst_34 : f32 to vector<8x8xf32>
    %159 = arith.select %157, %155, %158 : vector<8x8xi1>, vector<8x8xf32>
    %160 = arith.addf %153, %159 : vector<8x8xf32>
    %161 = vector.extract_strided_slice %123 {offsets = [0, 5], sizes = [8, 1], strides = [1, 1]} : vector<8x8xi1> to vector<8x1xi1>
    %162 = vector.extract_strided_slice %126 {offsets = [0, 40], sizes = [8, 8], strides = [1, 1]} : vector<8x128xf32> to vector<8x8xf32>
    %cst_35 = arith.constant 0.000000e+00 : f32
    %163 = vector.shape_cast %161 : vector<8x1xi1> to vector<8x1xi1>
    %164 = vector.broadcast %163 : vector<8x1xi1> to vector<8x8xi1>
    %165 = vector.broadcast %cst_35 : f32 to vector<8x8xf32>
    %166 = arith.select %164, %162, %165 : vector<8x8xi1>, vector<8x8xf32>
    %167 = arith.addf %160, %166 : vector<8x8xf32>
    %168 = arith.extui %123 : vector<8x8xi1> to vector<8x8xi32>
    %169 = arith.sitofp %168 : vector<8x8xi32> to vector<8x8xf32>
    %c0_36 = arith.constant 0 : index
    %c0_37 = arith.constant 0 : index
    %170 = vector.load %arg6[%c0_36, %c0_37] : memref<8x8xf32, #tpu.memory_space<vmem>>, vector<8x8xf32>
    %cst_38 = arith.constant dense<0.000000e+00> : vector<8x8xf32>
    %171 = tpu.matmul %169, %170, %cst_38 {dimension_numbers = #tpu.dot_dimension_numbers<[1], [0], [0], [1], [0, 0, 1, 1], [], []>} : vector<8x8xf32>, vector<8x8xf32>, vector<8x8xf32> -> vector<8x8xf32>
    %172 = arith.addf %167, %171 : vector<8x8xf32>
    %c0_39 = arith.constant 0 : index
    %c0_40 = arith.constant 0 : index
    %173 = vector.load %arg7[%c0_39, %c0_40] : memref<8x128xf32, #tpu.memory_space<vmem>>, vector<8x128xf32>
    %cst_41 = arith.constant dense<0.000000e+00> : vector<8x128xf32>
    %174 = tpu.matmul %172, %173, %cst_41 {dimension_numbers = #tpu.dot_dimension_numbers<[1], [0], [0], [1], [0, 0, 1, 1], [], []>} : vector<8x8xf32>, vector<8x128xf32>, vector<8x128xf32> -> vector<8x128xf32>
    %c0_42 = arith.constant 0 : index
    %c0_43 = arith.constant 0 : index
    %175 = vector.load %arg8[%c0_42, %c0_43] : memref<8x128xf32, #tpu.memory_space<vmem>>, vector<8x128xf32>
    tpu.vector_store %arg8[%c0_42, %c0_43], %174 {strides = array<i32>} : memref<8x128xf32, #tpu.memory_space<vmem>>, vector<8x128xf32>,
    return
  }
  func.func @transform_0(%arg0: i32) -> (i32, i32) {
    %c0_i32 = arith.constant 0 : i32
    %c0_i32_0 = arith.constant 0 : i32
    return %arg0, %c0_i32 : i32, i32
  }
  func.func @transform_1(%arg0: i32) -> (i32, i32) {
    %c0_i32 = arith.constant 0 : i32
    %c0_i32_0 = arith.constant 0 : i32
    %c0_i32_1 = arith.constant 0 : i32
    return %c0_i32, %c0_i32_0 : i32, i32
  }
  func.func @transform_2(%arg0: i32) -> (i32, i32) {
    %c0_i32 = arith.constant 0 : i32
    %c0_i32_0 = arith.constant 0 : i32
    %c0_i32_1 = arith.constant 0 : i32
    return %c0_i32, %c0_i32_0 : i32, i32
  }
  func.func @transform_3(%arg0: i32) -> (i32, i32) {
    %c0_i32 = arith.constant 0 : i32
    %c0_i32_0 = arith.constant 0 : i32
    %c0_i32_1 = arith.constant 0 : i32
    return %c0_i32, %c0_i32_0 : i32, i32
  }
  func.func @transform_4(%arg0: i32) -> (i32, i32) {
    %c0_i32 = arith.constant 0 : i32
    %c0_i32_0 = arith.constant 0 : i32
    %c0_i32_1 = arith.constant 0 : i32
    return %c0_i32, %c0_i32_0 : i32, i32
  }
  func.func @transform_5(%arg0: i32) -> (i32, i32) {
    %c0_i32 = arith.constant 0 : i32
    %c0_i32_0 = arith.constant 0 : i32
    %c0_i32_1 = arith.constant 0 : i32
    return %c0_i32, %c0_i32_0 : i32, i32
  }
  func.func @transform_6(%arg0: i32) -> (i32, i32) {
    %c0_i32 = arith.constant 0 : i32
    %c0_i32_0 = arith.constant 0 : i32
    %c0_i32_1 = arith.constant 0 : i32
    return %c0_i32, %c0_i32_0 : i32, i32
  }
  func.func @transform_7(%arg0: i32) -> (i32, i32) {
    %c0_i32 = arith.constant 0 : i32
    %c0_i32_0 = arith.constant 0 : i32
    return %arg0, %c0_i32 : i32, i32
  }
}

</mosaic_0001>

<llo_original>
// kernel: tpu_custom_call.1
$region0: #{tpu_custom_call.1}
  #allocation0 [shape = 'u32[]', space=smem, size = 0x4, offset = 0x4, fixed_abs, tag = 'smem constant byte address 0x4 - core index']
  #allocation1 [shape = 'u32[144,128]{1,0:T(1,128)}', space=vmem, size = 0x12000, scoped, tag = 'internal scratch']
  %s0 = inlined_call_operand.hbm [shape: s32[8,7], index: 0, kind: input, shape index: {}]
  %s1 = inlined_call_operand.hbm [shape: bf16[16,32], index: 1, kind: input, shape index: {}]
  %s2 = inlined_call_operand.hbm [shape: bf16[32,256], index: 2, kind: input, shape index: {}]
  %s3 = inlined_call_operand.hbm [shape: bf16[8,32], index: 3, kind: input, shape index: {}]
  %s4 = inlined_call_operand.hbm [shape: bf16[32,128], index: 4, kind: input, shape index: {}]
  %s5 = inlined_call_operand.vmem [shape: f32[8,8], index: 5, kind: input, shape index: {}]
  %s6 = inlined_call_operand.hbm [shape: f32[8,128], index: 6, kind: input, shape index: {}]
  %s7 = inlined_call_operand.hbm [shape: f32[8,128], index: 7, kind: output, shape index: {}]
  %s8 = sld [smem:[#allocation0]]
  $region62: #{tpu_custom_call.1} parent=0
    _
  %s10 = ssub.s32 1, %s8
  %s11 = scalar_select 0, %s10, %s8
  $region1: #{tpu_custom_call.1} parent=0
    #allocation2 [shape = 'u8[4096]{0}', space=vmem, size = 0x1000, scoped, tag = 'input window, operand 0, single buffered']
    #allocation3 [shape = 's32[1]{0}', space=sflag, size = 0x4, scoped, tag = 'scoped memory for tpu_custom_call.1']
    #allocation4 [shape = 's32[1]{0}', space=sflag, size = 0x4, scoped, tag = 'scoped memory for tpu_custom_call.1']
    #allocation5 [shape = 'u8[4096]{0}', space=vmem, size = 0x1000, scoped, tag = 'input window, operand 1, single buffered']
    #allocation6 [shape = 's32[1]{0}', space=sflag, size = 0x4, scoped, tag = 'scoped memory for tpu_custom_call.1']
    #allocation7 [shape = 'u8[16384]{0}', space=vmem, size = 0x4000, scoped, tag = 'input window, operand 2, single buffered']
    #allocation8 [shape = 'u8[2048]{0}', space=vmem, size = 0x800, scoped, tag = 'input window, operand 3, single buffered']
    #allocation9 [shape = 's32[1]{0}', space=sflag, size = 0x4, scoped, tag = 'scoped memory for tpu_custom_call.1']
    #allocation10 [shape = 'u8[8192]{0}', space=vmem, size = 0x2000, scoped, tag = 'input window, operand 4, single buffered']
    #allocation11 [shape = 'u8[4096]{0}', space=vmem, size = 0x1000, scoped, tag = 'input window, operand 6, single buffered']
    #allocation12 [shape = 's32[1]{0}', space=sflag, size = 0x4, scoped, tag = 'scoped memory for tpu_custom_call.1']
    #allocation13 [shape = 'u8[4096]{0}', space=vmem, size = 0x1000, scoped, tag = 'output window, operand 0, single buffered']
    %12 = vsyncpa [#allocation3], 0
    %13 = vsyncpa [#allocation6], 0
    %14 = vsyncpa [#allocation9], 0
    %15 = vsyncpa [#allocation12], 0
    %16 = vsyncpa [#allocation4], 0
    // Predicated region
    $region2: #{tpu_custom_call.1} parent=1 // pred_check
      _
    $region3: #{tpu_custom_call.1} parent=1 // pred_check_branch
      %18 = sbr.rel (0) target = $region5
    $region4: #{tpu_custom_call.1} parent=1 // pred_region
      %s20 = ssub.s32 128, 128
      %21 = vsyncadd [#allocation3], %s20
      %s23 = sshll.u32 [#allocation2], 4
      %s24 = int_to_ptr.vmem [resolvable:$true] %s23
      %26 = dma.hbm_to_vmem [thread:$0]  %s0, 128, %s24, [#allocation3]
    $region5: #{tpu_custom_call.1} parent=1 // pred_fallthru
      _
    // Predicated region
    $region6: #{tpu_custom_call.1} parent=1 // pred_check
      _
    $region7: #{tpu_custom_call.1} parent=1 // pred_check_branch
      %28 = sbr.rel (0) target = $region9
    $region8: #{tpu_custom_call.1} parent=1 // pred_region
      %s30 = ssub.s32 128, 128
      %31 = vsyncadd [#allocation6], %s30
      %s32 = sshll.u32 [#allocation5], 4
      %s33 = int_to_ptr.vmem [resolvable:$true] %s32
      %38 = dma.hbm_to_vmem [thread:$0]  %s1, 128, %s33, [#allocation6], 64, 64, 4
    $region9: #{tpu_custom_call.1} parent=1 // pred_fallthru
      _
    // Predicated region
    $region10: #{tpu_custom_call.1} parent=1 // pred_check
      _
    $region11: #{tpu_custom_call.1} parent=1 // pred_check_branch
      %40 = sbr.rel (0) target = $region13
    $region12: #{tpu_custom_call.1} parent=1 // pred_region
      %s42 = ssub.s32 512, 512
      %43 = vsyncadd [#allocation6], %s42
      %s44 = sshll.u32 [#allocation7], 4
      %s45 = int_to_ptr.vmem [resolvable:$true] %s44
      %50 = dma.hbm_to_vmem [thread:$0]  %s2, 512, %s45, [#allocation6], 128, 128, 8
    $region13: #{tpu_custom_call.1} parent=1 // pred_fallthru
      _
    // Predicated region
    $region14: #{tpu_custom_call.1} parent=1 // pred_check
      _
    $region15: #{tpu_custom_call.1} parent=1 // pred_check_branch
      %52 = sbr.rel (0) target = $region17
    $region16: #{tpu_custom_call.1} parent=1 // pred_region
      %s54 = ssub.s32 64, 64
      %55 = vsyncadd [#allocation9], %s54
      %s57 = sshll.u32 [#allocation8], 4
      %s58 = int_to_ptr.vmem [resolvable:$true] %s57
      %60 = dma.hbm_to_vmem [thread:$0]  %s3, 64, %s58, [#allocation9]
    $region17: #{tpu_custom_call.1} parent=1 // pred_fallthru
      _
    // Predicated region
    $region18: #{tpu_custom_call.1} parent=1 // pred_check
      _
    $region19: #{tpu_custom_call.1} parent=1 // pred_check_branch
      %62 = sbr.rel (0) target = $region21
    $region20: #{tpu_custom_call.1} parent=1 // pred_region
      %s64 = ssub.s32 256, 256
      %65 = vsyncadd [#allocation9], %s64
      %s66 = sshll.u32 [#allocation10], 4
      %s67 = int_to_ptr.vmem [resolvable:$true] %s66
      %72 = dma.hbm_to_vmem [thread:$0]  %s4, 256, %s67, [#allocation9], 64, 64, 4
    $region21: #{tpu_custom_call.1} parent=1 // pred_fallthru
      _
    // Predicated region
    $region22: #{tpu_custom_call.1} parent=1 // pred_check
      _
    $region23: #{tpu_custom_call.1} parent=1 // pred_check_branch
      %74 = sbr.rel (0) target = $region25
    $region24: #{tpu_custom_call.1} parent=1 // pred_region
      _
    $region25: #{tpu_custom_call.1} parent=1 // pred_fallthru
      _
    // Predicated region
    $region26: #{tpu_custom_call.1} parent=1 // pred_check
      _
    $region27: #{tpu_custom_call.1} parent=1 // pred_check_branch
      %76 = sbr.rel (0) target = $region29
    $region28: #{tpu_custom_call.1} parent=1 // pred_region
      %s78 = ssub.s32 128, 128
      %79 = vsyncadd [#allocation12], %s78
      %s81 = sshll.u32 [#allocation11], 4
      %s82 = int_to_ptr.vmem [resolvable:$true] %s81
      %84 = dma.hbm_to_vmem [thread:$0]  %s6, 128, %s82, [#allocation12]
    $region29: #{tpu_custom_call.1} parent=1 // pred_fallthru
      _
    // Predicated region
    $region30: #{tpu_custom_call.1} parent=1 // pred_check
      _
    $region31: #{tpu_custom_call.1} parent=1 // pred_check_branch
      %86 = sbr.rel (0) target = $region33
    $region32: #{tpu_custom_call.1} parent=1 // pred_region
      %87 = dma.done [#allocation3], 128
    $region33: #{tpu_custom_call.1} parent=1 // pred_fallthru
      _
    // Predicated region
    $region34: #{tpu_custom_call.1} parent=1 // pred_check
      _
    $region35: #{tpu_custom_call.1} parent=1 // pred_check_branch
      %89 = sbr.rel (0) target = $region37
    $region36: #{tpu_custom_call.1} parent=1 // pred_region
      %90 = dma.done [#allocation6], 128
    $region37: #{tpu_custom_call.1} parent=1 // pred_fallthru
      _
    // Predicated region
    $region38: #{tpu_custom_call.1} parent=1 // pred_check
      _
    $region39: #{tpu_custom_call.1} parent=1 // pred_check_branch
      %92 = sbr.rel (0) target = $region41
    $region40: #{tpu_custom_call.1} parent=1 // pred_region
      %93 = dma.done [#allocation6], 512
    $region41: #{tpu_custom_call.1} parent=1 // pred_fallthru
      _
    // Predicated region
    $region42: #{tpu_custom_call.1} parent=1 // pred_check
      _
    $region43: #{tpu_custom_call.1} parent=1 // pred_check_branch
      %95 = sbr.rel (0) target = $region45
    $region44: #{tpu_custom_call.1} parent=1 // pred_region
      %96 = dma.done [#allocation9], 64
    $region45: #{tpu_custom_call.1} parent=1 // pred_fallthru
      _
    // Predicated region
    $region46: #{tpu_custom_call.1} parent=1 // pred_check
      _
    $region47: #{tpu_custom_call.1} parent=1 // pred_check_branch
      %98 = sbr.rel (0) target = $region49
    $region48: #{tpu_custom_call.1} parent=1 // pred_region
      %99 = dma.done [#allocation9], 256
    $region49: #{tpu_custom_call.1} parent=1 // pred_fallthru
      _
    // Predicated region
    $region50: #{tpu_custom_call.1} parent=1 // pred_check
      _
    $region51: #{tpu_custom_call.1} parent=1 // pred_check_branch
      %101 = sbr.rel (0) target = $region53
    $region52: #{tpu_custom_call.1} parent=1 // pred_region
      %102 = dma.done [#allocation12], 128
    $region53: #{tpu_custom_call.1} parent=1 // pred_fallthru
      _
    %v104 = vld [vmem:[#allocation2] sm:$0xff]
    %v105 = vlaneseq
    %v106 = vand.u32 %v105, 127
    %107 = vset.pattern.permute.xlu0 0
    %108 = vperm.xlu0 %107, %v104
    %v109 = vpop.permute.xlu0 %108
    %vm110 = vcmp.eq.s32.totalorder %v109, %v106
    %v111 = vsel %vm110, 1, 0
    %v112 = vcvt.s32.f32 %v111
    %v113 = vpack.c.bf16 %v112, %v112
    %v114 = vld [vmem:[#allocation5] sm:$0xf]
    %v115 = vld [vmem:[#allocation5 + $0x4] sm:$0xf]
    %v118 = vunpack.c.l.b16 %v114
    %v119 = vunpack.c.l.b16 %v115
    %v120 = vpack.c.b16 %v119, %v118
    %vm122 = vcmask 130048
    %v124 = vsel %vm122, %v113, 0
    %126 = vmatprep.subr.bf16.mxu0 0
    %127 = vmatpush1.bf16.msra.mxu0 0
    %128 = vmatprep.subr.bf16.mxu0 0
    %129 = vmatpush1.bf16.msra.mxu0 0
    %130 = vmatprep.subr.bf16.mxu0 0
    %131 = vmatpush1.bf16.msra.mxu0 0
    %132 = vmatprep.subr.bf16.mxu0 0
    %133 = vmatpush1.bf16.msra.mxu0 0
    %134 = vmatprep.subr.bf16.mxu0 0
    %135 = vmatpush1.bf16.msra.mxu0 0
    %136 = vmatprep.subr.bf16.mxu0 0
    %137 = vmatpush1.bf16.msra.mxu0 0
    %138 = vmatprep.subr.bf16.mxu0 0
    %139 = vmatpush1.bf16.msra.mxu0 0
    %140 = vmatprep.subr.bf16.mxu0 0
    %141 = vmatpush1.bf16.msra.mxu0 %v120
    %142 = vmatprep.subr.bf16.mxu0 0
    %143 = vmatpush2.bf16.msra.mxu0 0
    %144 = vmatprep.subr.bf16.mxu0 0
    %145 = vmatpush2.bf16.msra.mxu0 0
    %146 = vmatprep.subr.bf16.mxu0 0
    %147 = vmatpush2.bf16.msra.mxu0 0
    %148 = vmatprep.subr.bf16.mxu0 0
    %149 = vmatpush2.bf16.msra.mxu0 0
    %150 = vmatprep.subr.bf16.mxu0 0
    %151 = vmatpush2.bf16.msra.mxu0 0
    %152 = vmatprep.subr.bf16.mxu0 0
    %153 = vmatpush2.bf16.msra.mxu0 0
    %154 = vmatprep.subr.bf16.mxu0 0
    %155 = vmatpush2.bf16.msra.mxu0 0
    %156 = vmatprep.subr.bf16.mxu0 0
    %157 = vmatpush2.bf16.msra.mxu0 0
    %158 = vmatprep.mubr.bf16.mxu0 0
    %159 = vmatmul.mubr.bf16.gmra.mxu0 %v124
    %v160 = vpop.f32.mrf.mxu0
    %v161 = vadd.f32 0.0, %v160
    %v162 = vpop.f32.mrf.mxu0
    %v163 = vpop.f32.mrf.mxu0
    %v164 = vpop.f32.mrf.mxu0
    %165 = vdwg.mxu0
    %166 = vset.pattern.permute.xlu0 1
    %167 = vperm.xlu0 %166, %v104
    %v168 = vpop.permute.xlu0 %167
    %vm169 = vcmp.eq.s32.totalorder %v168, %v106
    %v170 = vpack.c.bf16 %v161, %v161
    %v171 = vld [vmem:[#allocation7] sm:$0xff]
    %v172 = vld [vmem:[#allocation7 + $0x8] sm:$0xff]
    %v173 = vld [vmem:[#allocation7 + $0x10] sm:$0xff]
    %v174 = vld [vmem:[#allocation7 + $0x18] sm:$0xff]
    %v179 = vunpack.c.l.b16 %v171
    %v180 = vunpack.c.h.b16 %v171
    %v181 = vunpack.c.l.b16 %v172
    %v182 = vunpack.c.h.b16 %v172
    %v183 = vunpack.c.l.b16 %v173
    %v184 = vunpack.c.h.b16 %v173
    %v185 = vunpack.c.l.b16 %v174
    %v186 = vunpack.c.h.b16 %v174
    %v187 = vpack.c.b16 %v181, %v179
    %v188 = vpack.c.b16 %v182, %v180
    %v189 = vpack.c.b16 %v185, %v183
    %v190 = vpack.c.b16 %v186, %v184
    %vm195 = vcmask 261120
    %v197 = vsel %vm195, %v170, 0
    %199 = vmatprep.subr.bf16.mxu0 0
    %200 = vmatpush1.bf16.msra.mxu0 0
    %201 = vmatprep.subr.bf16.mxu0 0
    %202 = vmatpush1.bf16.msra.mxu0 0
    %203 = vmatprep.subr.bf16.mxu0 0
    %204 = vmatpush1.bf16.msra.mxu0 0
    %205 = vmatprep.subr.bf16.mxu0 0
    %206 = vmatpush1.bf16.msra.mxu0 0
    %207 = vmatprep.subr.bf16.mxu0 0
    %208 = vmatpush1.bf16.msra.mxu0 0
    %209 = vmatprep.subr.bf16.mxu0 0
    %210 = vmatpush1.bf16.msra.mxu0 0
    %211 = vmatprep.subr.bf16.mxu0 %v190
    %212 = vmatpush1.bf16.msra.mxu0 %v189
    %213 = vmatprep.subr.bf16.mxu0 %v188
    %214 = vmatpush1.bf16.msra.mxu0 %v187
    %215 = vmatprep.subr.bf16.mxu0 0
    %216 = vmatpush2.bf16.msra.mxu0 0
    %217 = vmatprep.subr.bf16.mxu0 0
    %218 = vmatpush2.bf16.msra.mxu0 0
    %219 = vmatprep.subr.bf16.mxu0 0
    %220 = vmatpush2.bf16.msra.mxu0 0
    %221 = vmatprep.subr.bf16.mxu0 0
    %222 = vmatpush2.bf16.msra.mxu0 0
    %223 = vmatprep.subr.bf16.mxu0 0
    %224 = vmatpush2.bf16.msra.mxu0 0
    %225 = vmatprep.subr.bf16.mxu0 0
    %226 = vmatpush2.bf16.msra.mxu0 0
    %227 = vmatprep.subr.bf16.mxu0 0
    %228 = vmatpush2.bf16.msra.mxu0 0
    %229 = vmatprep.subr.bf16.mxu0 0
    %230 = vmatpush2.bf16.msra.mxu0 0
    %231 = vmatprep.mubr.bf16.mxu0 0
    %232 = vmatmul.mubr.bf16.gmra.mxu0 %v197
    %v233 = vpop.f32.mrf.mxu0
    %v234 = vadd.f32 0.0, %v233
    %v235 = vpop.f32.mrf.mxu0
    %v236 = vadd.f32 0.0, %v235
    %v237 = vpop.f32.mrf.mxu0
    %v238 = vpop.f32.mrf.mxu0
    %239 = vdwg.mxu0
    %v240 = vsel %vm169, 1, 0
    %241 = vset.pattern.permute.xlu0 0
    %242 = vperm.xlu0 %241, %v240
    %v243 = vpop.permute.xlu0 %242
    %vm244 = vcmp.eq.s32.totalorder %v243, 1
    %v245 = vsel %vm244, %v234, 0.0
    %246 = vset.pattern.permute.xlu0 1
    %247 = vperm.xlu0 %246, %v240
    %v248 = vpop.permute.xlu0 %247
    %vm249 = vcmp.eq.s32.totalorder %v248, 1
    %v250 = vsel %vm249, %v234, 0.0
    %252 = vrot.lane.b32.xlu0 %v250, 96
    %v253 = vpop.permute.xlu0 %252
    %v255 = vadd.f32 %v245, %v253
    %256 = vset.pattern.permute.xlu0 2
    %257 = vperm.xlu0 %256, %v240
    %v258 = vpop.permute.xlu0 %257
    %vm259 = vcmp.eq.s32.totalorder %v258, 1
    %v260 = vsel %vm259, %v234, 0.0
    %262 = vrot.lane.b32.xlu0 %v260, 64
    %v263 = vpop.permute.xlu0 %262
    %v265 = vadd.f32 %v255, %v263
    %266 = vset.pattern.permute.xlu0 3
    %267 = vperm.xlu0 %266, %v240
    %v268 = vpop.permute.xlu0 %267
    %vm269 = vcmp.eq.s32.totalorder %v268, 1
    %v270 = vsel %vm269, %v234, 0.0
    %272 = vrot.lane.b32.xlu0 %v270, 32
    %v273 = vpop.permute.xlu0 %272
    %v275 = vadd.f32 %v265, %v273
    %276 = vset.pattern.permute.xlu0 4
    %277 = vperm.xlu0 %276, %v240
    %v278 = vpop.permute.xlu0 %277
    %vm279 = vcmp.eq.s32.totalorder %v278, 1
    %v280 = vsel %vm279, %v236, 0.0
    %v281 = vadd.f32 %v275, %v280
    %282 = vset.pattern.permute.xlu0 5
    %283 = vperm.xlu0 %282, %v240
    %v284 = vpop.permute.xlu0 %283
    %vm285 = vcmp.eq.s32.totalorder %v284, 1
    %v286 = vsel %vm285, %v236, 0.0
    %288 = vrot.lane.b32.xlu0 %v286, 96
    %v289 = vpop.permute.xlu0 %288
    %v291 = vadd.f32 %v281, %v289
    %v292 = vcvt.s32.f32 %v240
    %v293 = vpack.c.bf16 %v292, %v292
    %v294 = vld [vmem:[#allocation8] sm:$0xf]
    %vm295 = vcmask 64512
    %v297 = vsel %vm295, %v293, 0
    %vm299 = vcmask 1043456
    %v301 = vsel %vm299, %v294, 0
    %303 = vmatprep.subr.bf16.mxu0 0
    %304 = vmatpush1.bf16.msra.mxu0 0
    %305 = vmatprep.subr.bf16.mxu0 0
    %306 = vmatpush1.bf16.msra.mxu0 0
    %307 = vmatprep.subr.bf16.mxu0 0
    %308 = vmatpush1.bf16.msra.mxu0 0
    %309 = vmatprep.subr.bf16.mxu0 0
    %310 = vmatpush1.bf16.msra.mxu0 0
    %311 = vmatprep.subr.bf16.mxu0 0
    %312 = vmatpush1.bf16.msra.mxu0 0
    %313 = vmatprep.subr.bf16.mxu0 0
    %314 = vmatpush1.bf16.msra.mxu0 0
    %315 = vmatprep.subr.bf16.mxu0 0
    %316 = vmatpush1.bf16.msra.mxu0 0
    %317 = vmatprep.subr.bf16.mxu0 0
    %318 = vmatpush1.bf16.msra.mxu0 %v301
    %319 = vmatprep.subr.bf16.mxu0 0
    %320 = vmatpush2.bf16.msra.mxu0 0
    %321 = vmatprep.subr.bf16.mxu0 0
    %322 = vmatpush2.bf16.msra.mxu0 0
    %323 = vmatprep.subr.bf16.mxu0 0
    %324 = vmatpush2.bf16.msra.mxu0 0
    %325 = vmatprep.subr.bf16.mxu0 0
    %326 = vmatpush2.bf16.msra.mxu0 0
    %327 = vmatprep.subr.bf16.mxu0 0
    %328 = vmatpush2.bf16.msra.mxu0 0
    %329 = vmatprep.subr.bf16.mxu0 0
    %330 = vmatpush2.bf16.msra.mxu0 0
    %331 = vmatprep.subr.bf16.mxu0 0
    %332 = vmatpush2.bf16.msra.mxu0 0
    %333 = vmatprep.subr.bf16.mxu0 0
    %334 = vmatpush2.bf16.msra.mxu0 0
    %335 = vmatprep.mubr.bf16.mxu0 0
    %336 = vmatmul.mubr.bf16.gmra.mxu0 %v297
    %v337 = vpop.f32.mrf.mxu0
    %v338 = vadd.f32 0.0, %v337
    %v339 = vpop.f32.mrf.mxu0
    %v340 = vpop.f32.mrf.mxu0
    %v341 = vpop.f32.mrf.mxu0
    %342 = vdwg.mxu0
    %v343 = vadd.f32 %v291, %v338
    %v344 = vtanh.pop %v343
    %345 = vset.pattern.permute.xlu0 3
    %346 = vperm.xlu0 %345, %v104
    %v347 = vpop.permute.xlu0 %346
    %vm348 = vcmp.eq.s32.totalorder %v347, %v106
    %v349 = vpack.c.bf16 %v344, %v344
    %v351 = vsel %vm195, %v349, 0
    %353 = vmatprep.subr.bf16.mxu0 0
    %354 = vmatpush1.bf16.msra.mxu0 0
    %355 = vmatprep.subr.bf16.mxu0 0
    %356 = vmatpush1.bf16.msra.mxu0 0
    %357 = vmatprep.subr.bf16.mxu0 0
    %358 = vmatpush1.bf16.msra.mxu0 0
    %359 = vmatprep.subr.bf16.mxu0 0
    %360 = vmatpush1.bf16.msra.mxu0 0
    %361 = vmatprep.subr.bf16.mxu0 0
    %362 = vmatpush1.bf16.msra.mxu0 0
    %363 = vmatprep.subr.bf16.mxu0 0
    %364 = vmatpush1.bf16.msra.mxu0 0
    %365 = vmatprep.subr.bf16.mxu0 %v190
    %366 = vmatpush1.bf16.msra.mxu0 %v189
    %367 = vmatprep.subr.bf16.mxu0 %v188
    %368 = vmatpush1.bf16.msra.mxu0 %v187
    %369 = vmatprep.subr.bf16.mxu0 0
    %370 = vmatpush2.bf16.msra.mxu0 0
    %371 = vmatprep.subr.bf16.mxu0 0
    %372 = vmatpush2.bf16.msra.mxu0 0
    %373 = vmatprep.subr.bf16.mxu0 0
    %374 = vmatpush2.bf16.msra.mxu0 0
    %375 = vmatprep.subr.bf16.mxu0 0
    %376 = vmatpush2.bf16.msra.mxu0 0
    %377 = vmatprep.subr.bf16.mxu0 0
    %378 = vmatpush2.bf16.msra.mxu0 0
    %379 = vmatprep.subr.bf16.mxu0 0
    %380 = vmatpush2.bf16.msra.mxu0 0
    %381 = vmatprep.subr.bf16.mxu0 0
    %382 = vmatpush2.bf16.msra.mxu0 0
    %383 = vmatprep.subr.bf16.mxu0 0
    %384 = vmatpush2.bf16.msra.mxu0 0
    %385 = vmatprep.mubr.bf16.mxu0 0
    %386 = vmatmul.mubr.bf16.gmra.mxu0 %v351
    %v387 = vpop.f32.mrf.mxu0
    %v388 = vadd.f32 0.0, %v387
    %v389 = vpop.f32.mrf.mxu0
    %v390 = vadd.f32 0.0, %v389
    %v391 = vpop.f32.mrf.mxu0
    %v392 = vpop.f32.mrf.mxu0
    %393 = vdwg.mxu0
    %v394 = vsel %vm348, 1, 0
    %395 = vset.pattern.permute.xlu0 0
    %396 = vperm.xlu0 %395, %v394
    %v397 = vpop.permute.xlu0 %396
    %vm398 = vcmp.eq.s32.totalorder %v397, 1
    %v399 = vsel %vm398, %v388, 0.0
    %400 = vset.pattern.permute.xlu0 1
    %401 = vperm.xlu0 %400, %v394
    %v402 = vpop.permute.xlu0 %401
    %vm403 = vcmp.eq.s32.totalorder %v402, 1
    %v404 = vsel %vm403, %v388, 0.0
    %406 = vrot.lane.b32.xlu0 %v404, 96
    %v407 = vpop.permute.xlu0 %406
    %v409 = vadd.f32 %v399, %v407
    %410 = vset.pattern.permute.xlu0 2
    %411 = vperm.xlu0 %410, %v394
    %v412 = vpop.permute.xlu0 %411
    %vm413 = vcmp.eq.s32.totalorder %v412, 1
    %v414 = vsel %vm413, %v388, 0.0
    %416 = vrot.lane.b32.xlu0 %v414, 64
    %v417 = vpop.permute.xlu0 %416
    %v419 = vadd.f32 %v409, %v417
    %420 = vset.pattern.permute.xlu0 3
    %421 = vperm.xlu0 %420, %v394
    %v422 = vpop.permute.xlu0 %421
    %vm423 = vcmp.eq.s32.totalorder %v422, 1
    %v424 = vsel %vm423, %v388, 0.0
    %426 = vrot.lane.b32.xlu0 %v424, 32
    %v427 = vpop.permute.xlu0 %426
    %v429 = vadd.f32 %v419, %v427
    %430 = vset.pattern.permute.xlu0 4
    %431 = vperm.xlu0 %430, %v394
    %v432 = vpop.permute.xlu0 %431
    %vm433 = vcmp.eq.s32.totalorder %v432, 1
    %v434 = vsel %vm433, %v390, 0.0
    %v435 = vadd.f32 %v429, %v434
    %436 = vset.pattern.permute.xlu0 5
    %437 = vperm.xlu0 %436, %v394
    %v438 = vpop.permute.xlu0 %437
    %vm439 = vcmp.eq.s32.totalorder %v438, 1
    %v440 = vsel %vm439, %v390, 0.0
    %442 = vrot.lane.b32.xlu0 %v440, 96
    %v443 = vpop.permute.xlu0 %442
    %v445 = vadd.f32 %v435, %v443
    %v446 = vcvt.s32.f32 %v394
    %v447 = vpack.c.bf16 %v446, %v446
    %v449 = vsel %vm295, %v447, 0
    %451 = vmatprep.subr.bf16.mxu0 0
    %452 = vmatpush1.bf16.msra.mxu0 0
    %453 = vmatprep.subr.bf16.mxu0 0
    %454 = vmatpush1.bf16.msra.mxu0 0
    %455 = vmatprep.subr.bf16.mxu0 0
    %456 = vmatpush1.bf16.msra.mxu0 0
    %457 = vmatprep.subr.bf16.mxu0 0
    %458 = vmatpush1.bf16.msra.mxu0 0
    %459 = vmatprep.subr.bf16.mxu0 0
    %460 = vmatpush1.bf16.msra.mxu0 0
    %461 = vmatprep.subr.bf16.mxu0 0
    %462 = vmatpush1.bf16.msra.mxu0 0
    %463 = vmatprep.subr.bf16.mxu0 0
    %464 = vmatpush1.bf16.msra.mxu0 0
    %465 = vmatprep.subr.bf16.mxu0 0
    %466 = vmatpush1.bf16.msra.mxu0 %v301
    %467 = vmatprep.subr.bf16.mxu0 0
    %468 = vmatpush2.bf16.msra.mxu0 0
    %469 = vmatprep.subr.bf16.mxu0 0
    %470 = vmatpush2.bf16.msra.mxu0 0
    %471 = vmatprep.subr.bf16.mxu0 0
    %472 = vmatpush2.bf16.msra.mxu0 0
    %473 = vmatprep.subr.bf16.mxu0 0
    %474 = vmatpush2.bf16.msra.mxu0 0
    %475 = vmatprep.subr.bf16.mxu0 0
    %476 = vmatpush2.bf16.msra.mxu0 0
    %477 = vmatprep.subr.bf16.mxu0 0
    %478 = vmatpush2.bf16.msra.mxu0 0
    %479 = vmatprep.subr.bf16.mxu0 0
    %480 = vmatpush2.bf16.msra.mxu0 0
    %481 = vmatprep.subr.bf16.mxu0 0
    %482 = vmatpush2.bf16.msra.mxu0 0
    %483 = vmatprep.mubr.bf16.mxu0 0
    %484 = vmatmul.mubr.bf16.gmra.mxu0 %v449
    %v485 = vpop.f32.mrf.mxu0
    %v486 = vadd.f32 0.0, %v485
    %v487 = vpop.f32.mrf.mxu0
    %v488 = vpop.f32.mrf.mxu0
    %v489 = vpop.f32.mrf.mxu0
    %490 = vdwg.mxu0
    %v491 = vadd.f32 %v445, %v486
    %v492 = vtanh.pop %v491
    %493 = vset.pattern.permute.xlu0 5
    %494 = vperm.xlu0 %493, %v104
    %v495 = vpop.permute.xlu0 %494
    %vm496 = vcmp.eq.s32.totalorder %v495, %v106
    %v497 = vpack.c.bf16 %v492, %v492
    %v498 = vld [vmem:[#allocation10] sm:$0xf]
    %v499 = vld [vmem:[#allocation10 + $0x4] sm:$0xf]
    %v500 = vld [vmem:[#allocation10 + $0x8] sm:$0xf]
    %v501 = vld [vmem:[#allocation10 + $0xc] sm:$0xf]
    %v506 = vunpack.c.l.b16 %v498
    %v507 = vunpack.c.l.b16 %v499
    %v508 = vunpack.c.l.b16 %v500
    %v509 = vunpack.c.l.b16 %v501
    %v510 = vpack.c.b16 %v507, %v506
    %v511 = vpack.c.b16 %v509, %v508
    %v515 = vsel %vm195, %v497, 0
    %517 = vmatprep.subr.bf16.mxu0 0
    %518 = vmatpush1.bf16.msra.mxu0 0
    %519 = vmatprep.subr.bf16.mxu0 0
    %520 = vmatpush1.bf16.msra.mxu0 0
    %521 = vmatprep.subr.bf16.mxu0 0
    %522 = vmatpush1.bf16.msra.mxu0 0
    %523 = vmatprep.subr.bf16.mxu0 0
    %524 = vmatpush1.bf16.msra.mxu0 0
    %525 = vmatprep.subr.bf16.mxu0 0
    %526 = vmatpush1.bf16.msra.mxu0 0
    %527 = vmatprep.subr.bf16.mxu0 0
    %528 = vmatpush1.bf16.msra.mxu0 0
    %529 = vmatprep.subr.bf16.mxu0 0
    %530 = vmatpush1.bf16.msra.mxu0 %v511
    %531 = vmatprep.subr.bf16.mxu0 0
    %532 = vmatpush1.bf16.msra.mxu0 %v510
    %533 = vmatprep.subr.bf16.mxu0 0
    %534 = vmatpush2.bf16.msra.mxu0 0
    %535 = vmatprep.subr.bf16.mxu0 0
    %536 = vmatpush2.bf16.msra.mxu0 0
    %537 = vmatprep.subr.bf16.mxu0 0
    %538 = vmatpush2.bf16.msra.mxu0 0
    %539 = vmatprep.subr.bf16.mxu0 0
    %540 = vmatpush2.bf16.msra.mxu0 0
    %541 = vmatprep.subr.bf16.mxu0 0
    %542 = vmatpush2.bf16.msra.mxu0 0
    %543 = vmatprep.subr.bf16.mxu0 0
    %544 = vmatpush2.bf16.msra.mxu0 0
    %545 = vmatprep.subr.bf16.mxu0 0
    %546 = vmatpush2.bf16.msra.mxu0 0
    %547 = vmatprep.subr.bf16.mxu0 0
    %548 = vmatpush2.bf16.msra.mxu0 0
    %549 = vmatprep.mubr.bf16.mxu0 0
    %550 = vmatmul.mubr.bf16.gmra.mxu0 %v515
    %v551 = vpop.f32.mrf.mxu0
    %v552 = vadd.f32 0.0, %v551
    %v553 = vpop.f32.mrf.mxu0
    %v554 = vpop.f32.mrf.mxu0
    %v555 = vpop.f32.mrf.mxu0
    %556 = vdwg.mxu0
    %v557 = vsel %vm496, 1, 0
    %558 = vset.pattern.permute.xlu0 0
    %559 = vperm.xlu0 %558, %v557
    %v560 = vpop.permute.xlu0 %559
    %vm561 = vcmp.eq.s32.totalorder %v560, 1
    %v562 = vsel %vm561, %v552, 0.0
    %563 = vset.pattern.permute.xlu0 1
    %564 = vperm.xlu0 %563, %v557
    %v565 = vpop.permute.xlu0 %564
    %vm566 = vcmp.eq.s32.totalorder %v565, 1
    %v567 = vsel %vm566, %v552, 0.0
    %569 = vrot.lane.b32.xlu0 %v567, 120
    %v570 = vpop.permute.xlu0 %569
    %v572 = vadd.f32 %v562, %v570
    %573 = vset.pattern.permute.xlu0 2
    %574 = vperm.xlu0 %573, %v557
    %v575 = vpop.permute.xlu0 %574
    %vm576 = vcmp.eq.s32.totalorder %v575, 1
    %v577 = vsel %vm576, %v552, 0.0
    %579 = vrot.lane.b32.xlu0 %v577, 112
    %v580 = vpop.permute.xlu0 %579
    %v582 = vadd.f32 %v572, %v580
    %583 = vset.pattern.permute.xlu0 3
    %584 = vperm.xlu0 %583, %v557
    %v585 = vpop.permute.xlu0 %584
    %vm586 = vcmp.eq.s32.totalorder %v585, 1
    %v587 = vsel %vm586, %v552, 0.0
    %589 = vrot.lane.b32.xlu0 %v587, 104
    %v590 = vpop.permute.xlu0 %589
    %v592 = vadd.f32 %v582, %v590
    %593 = vset.pattern.permute.xlu0 4
    %594 = vperm.xlu0 %593, %v557
    %v595 = vpop.permute.xlu0 %594
    %vm596 = vcmp.eq.s32.totalorder %v595, 1
    %v597 = vsel %vm596, %v552, 0.0
    %599 = vrot.lane.b32.xlu0 %v597, 96
    %v600 = vpop.permute.xlu0 %599
    %v602 = vadd.f32 %v592, %v600
    %603 = vset.pattern.permute.xlu0 5
    %604 = vperm.xlu0 %603, %v557
    %v605 = vpop.permute.xlu0 %604
    %vm606 = vcmp.eq.s32.totalorder %v605, 1
    %v607 = vsel %vm606, %v552, 0.0
    %609 = vrot.lane.b32.xlu0 %v607, 88
    %v610 = vpop.permute.xlu0 %609
    %v612 = vadd.f32 %v602, %v610
    %v613 = vcvt.s32.f32 %v557
    %v614 = vld [vmem:[%s5] sm:$0xff]
    %v616 = vsel %vm295, %v613, 0
    %618 = vmatprep.subr.mxu0 0.0
    %619 = vmatpush1.msra.mxu0 0.0
    %620 = vmatprep.subr.mxu0 0.0
    %621 = vmatpush1.msra.mxu0 0.0
    %622 = vmatprep.subr.mxu0 0.0
    %623 = vmatpush1.msra.mxu0 0.0
    %624 = vmatprep.subr.mxu0 0.0
    %625 = vmatpush1.msra.mxu0 0.0
    %626 = vmatprep.subr.mxu0 0.0
    %627 = vmatpush1.msra.mxu0 0.0
    %628 = vmatprep.subr.mxu0 0.0
    %629 = vmatpush1.msra.mxu0 0.0
    %630 = vmatprep.subr.mxu0 0.0
    %631 = vmatpush1.msra.mxu0 0.0
    %632 = vmatprep.subr.mxu0 0.0
    %633 = vmatpush1.msra.mxu0 0.0
    %634 = vmatprep.subr.mxu0 0.0
    %635 = vmatpush1.msra.mxu0 0.0
    %636 = vmatprep.subr.mxu0 0.0
    %637 = vmatpush1.msra.mxu0 0.0
    %638 = vmatprep.subr.mxu0 0.0
    %639 = vmatpush1.msra.mxu0 0.0
    %640 = vmatprep.subr.mxu0 0.0
    %641 = vmatpush1.msra.mxu0 0.0
    %642 = vmatprep.subr.mxu0 0.0
    %643 = vmatpush1.msra.mxu0 0.0
    %644 = vmatprep.subr.mxu0 0.0
    %645 = vmatpush1.msra.mxu0 0.0
    %646 = vmatprep.subr.mxu0 0.0
    %647 = vmatpush1.msra.mxu0 0.0
    %648 = vmatprep.subr.mxu0 0.0
    %649 = vmatpush1.msra.mxu0 %v614
    %650 = vmatprep.subr.mxu0 0.0
    %651 = vmatpush2.msra.mxu0 0.0
    %652 = vmatprep.subr.mxu0 0.0
    %653 = vmatpush2.msra.mxu0 0.0
    %654 = vmatprep.subr.mxu0 0.0
    %655 = vmatpush2.msra.mxu0 0.0
    %656 = vmatprep.subr.mxu0 0.0
    %657 = vmatpush2.msra.mxu0 0.0
    %658 = vmatprep.subr.mxu0 0.0
    %659 = vmatpush2.msra.mxu0 0.0
    %660 = vmatprep.subr.mxu0 0.0
    %661 = vmatpush2.msra.mxu0 0.0
    %662 = vmatprep.subr.mxu0 0.0
    %663 = vmatpush2.msra.mxu0 0.0
    %664 = vmatprep.subr.mxu0 0.0
    %665 = vmatpush2.msra.mxu0 0.0
    %666 = vmatprep.subr.mxu0 0.0
    %667 = vmatpush2.msra.mxu0 0.0
    %668 = vmatprep.subr.mxu0 0.0
    %669 = vmatpush2.msra.mxu0 0.0
    %670 = vmatprep.subr.mxu0 0.0
    %671 = vmatpush2.msra.mxu0 0.0
    %672 = vmatprep.subr.mxu0 0.0
    %673 = vmatpush2.msra.mxu0 0.0
    %674 = vmatprep.subr.mxu0 0.0
    %675 = vmatpush2.msra.mxu0 0.0
    %676 = vmatprep.subr.mxu0 0.0
    %677 = vmatpush2.msra.mxu0 0.0
    %678 = vmatprep.subr.mxu0 0.0
    %679 = vmatpush2.msra.mxu0 0.0
    %680 = vmatprep.subr.mxu0 0.0
    %681 = vmatpush2.msra.mxu0 0.0
    %682 = vmatprep.mubr.f32.mxu0 0.0
    %683 = vmatmul.mubr.f32.gmra.mxu0 %v616
    %v684 = vpop.f32.mrf.mxu0
    %v685 = vadd.f32 0.0, %v684
    %v686 = vpop.f32.mrf.mxu0
    %687 = vdwg.mxu0
    %v688 = vadd.f32 %v612, %v685
    %v689 = vld [vmem:[#allocation11] sm:$0xff]
    %v691 = vsel %vm295, %v688, 0
    %693 = vmatprep.subr.mxu0 0.0
    %694 = vmatpush1.msra.mxu0 0.0
    %695 = vmatprep.subr.mxu0 0.0
    %696 = vmatpush1.msra.mxu0 0.0
    %697 = vmatprep.subr.mxu0 0.0
    %698 = vmatpush1.msra.mxu0 0.0
    %699 = vmatprep.subr.mxu0 0.0
    %700 = vmatpush1.msra.mxu0 0.0
    %701 = vmatprep.subr.mxu0 0.0
    %702 = vmatpush1.msra.mxu0 0.0
    %703 = vmatprep.subr.mxu0 0.0
    %704 = vmatpush1.msra.mxu0 0.0
    %705 = vmatprep.subr.mxu0 0.0
    %706 = vmatpush1.msra.mxu0 0.0
    %707 = vmatprep.subr.mxu0 0.0
    %708 = vmatpush1.msra.mxu0 0.0
    %709 = vmatprep.subr.mxu0 0.0
    %710 = vmatpush1.msra.mxu0 0.0
    %711 = vmatprep.subr.mxu0 0.0
    %712 = vmatpush1.msra.mxu0 0.0
    %713 = vmatprep.subr.mxu0 0.0
    %714 = vmatpush1.msra.mxu0 0.0
    %715 = vmatprep.subr.mxu0 0.0
    %716 = vmatpush1.msra.mxu0 0.0
    %717 = vmatprep.subr.mxu0 0.0
    %718 = vmatpush1.msra.mxu0 0.0
    %719 = vmatprep.subr.mxu0 0.0
    %720 = vmatpush1.msra.mxu0 0.0
    %721 = vmatprep.subr.mxu0 0.0
    %722 = vmatpush1.msra.mxu0 0.0
    %723 = vmatprep.subr.mxu0 0.0
    %724 = vmatpush1.msra.mxu0 %v689
    %725 = vmatprep.subr.mxu0 0.0
    %726 = vmatpush2.msra.mxu0 0.0
    %727 = vmatprep.subr.mxu0 0.0
    %728 = vmatpush2.msra.mxu0 0.0
    %729 = vmatprep.subr.mxu0 0.0
    %730 = vmatpush2.msra.mxu0 0.0
    %731 = vmatprep.subr.mxu0 0.0
    %732 = vmatpush2.msra.mxu0 0.0
    %733 = vmatprep.subr.mxu0 0.0
    %734 = vmatpush2.msra.mxu0 0.0
    %735 = vmatprep.subr.mxu0 0.0
    %736 = vmatpush2.msra.mxu0 0.0
    %737 = vmatprep.subr.mxu0 0.0
    %738 = vmatpush2.msra.mxu0 0.0
    %739 = vmatprep.subr.mxu0 0.0
    %740 = vmatpush2.msra.mxu0 0.0
    %741 = vmatprep.subr.mxu0 0.0
    %742 = vmatpush2.msra.mxu0 0.0
    %743 = vmatprep.subr.mxu0 0.0
    %744 = vmatpush2.msra.mxu0 0.0
    %745 = vmatprep.subr.mxu0 0.0
    %746 = vmatpush2.msra.mxu0 0.0
    %747 = vmatprep.subr.mxu0 0.0
    %748 = vmatpush2.msra.mxu0 0.0
    %749 = vmatprep.subr.mxu0 0.0
    %750 = vmatpush2.msra.mxu0 0.0
    %751 = vmatprep.subr.mxu0 0.0
    %752 = vmatpush2.msra.mxu0 0.0
    %753 = vmatprep.subr.mxu0 0.0
    %754 = vmatpush2.msra.mxu0 0.0
    %755 = vmatprep.subr.mxu0 0.0
    %756 = vmatpush2.msra.mxu0 0.0
    %757 = vmatprep.mubr.f32.mxu0 0.0
    %758 = vmatmul.mubr.f32.gmra.mxu0 %v691
    %v759 = vpop.f32.mrf.mxu0
    %v760 = vadd.f32 0.0, %v759
    %v761 = vpop.f32.mrf.mxu0
    %762 = vdwg.mxu0
    %763 = vst [vmem:[#allocation13] sm:$0xff] %v760
    // Predicated region
    $region54: #{tpu_custom_call.1} parent=1 // pred_check
      _
    $region55: #{tpu_custom_call.1} parent=1 // pred_check_branch
      %765 = sbr.rel (0) target = $region57
    $region56: #{tpu_custom_call.1} parent=1 // pred_region
      %s767 = ssub.s32 128, 128
      %768 = vsyncadd [#allocation4], %s767
      %s770 = sshll.u32 [#allocation13], 4
      %s771 = int_to_ptr.vmem [resolvable:$true] %s770
      %773 = dma.vmem_to_hbm [thread:$0]  %s771, 128, %s7, [#allocation4]
    $region57: #{tpu_custom_call.1} parent=1 // pred_fallthru
      _
    // Predicated region
    $region58: #{tpu_custom_call.1} parent=1 // pred_check
      _
    $region59: #{tpu_custom_call.1} parent=1 // pred_check_branch
      %775 = sbr.rel (0) target = $region61
    $region60: #{tpu_custom_call.1} parent=1 // pred_region
      %776 = dma.done [#allocation4], 128
    $region61: #{tpu_custom_call.1} parent=1 // pred_fallthru
      _
    %777 = vsyncpa [#allocation3], 1
    %778 = vsyncpa [#allocation6], 1
    %779 = vsyncpa [#allocation9], 1
    %780 = vsyncpa [#allocation12], 1
    %781 = vsyncpa [#allocation4], 1

</llo_original>
